<compile_context>
chip_gen: v7x
topology: tpu7x:2x2x1
jax: 0.10.0
libtpu: 0.0.40
codegen_flags: <defaults>
</compile_context>

<pallas_src>
import jax
import jax.numpy as jnp
from jax.experimental import pallas as pl
from jax.experimental.pallas import tpu as pltpu

IN_F = 2                 # true input features
HID = 25                 # true hidden width
OUT_F = 1                # true output width
PACK = 4                 # samples packed per 128-lane row
HPAD = 32                # per-sample hidden width after padding (25 -> 32)
LANE = PACK * HPAD       # 128 lanes
IN_LANES = PACK * IN_F   # 8 packed input lanes per row (all real data)
OUT_LANES = 8            # packed output lanes (samples live in lanes 0..3)
N_HID_LAYERS = 4         # layers 2..5
TILE_ROWS_MAX = 2048     # packed rows per grid step (= 8192 samples), ~few MiB VMEM
COMPUTE_DTYPE = jnp.bfloat16   # matmul operand dtype; accumulation stays f32


def mlp_kernel(x_ref, w_in_ref, w_hid_ref, b_hid_ref, w_out_ref, b_out_ref, o_ref):
    """One batch tile of the packed 6-layer MLP; all weights stay VMEM-resident."""
    x = x_ref[...].astype(COMPUTE_DTYPE)                         # (tile, 8)
    # Layer 1 (MXU, K=8): packed (8,128) weight maps sample g's 2 features to
    # lanes [32g, 32g+25); padded lanes get 0 and stay 0 through every ReLU.
    h = jnp.dot(x, w_in_ref[...], preferred_element_type=jnp.float32)
    h = jnp.maximum(h + b_hid_ref[0], 0.0).astype(COMPUTE_DTYPE)  # (tile, 128)
    # Layers 2..5: 128x128 block-diagonal weights (4 identical 32x32 blocks).
    for i in range(N_HID_LAYERS):
        h = jnp.dot(h, w_hid_ref[i], preferred_element_type=jnp.float32)
        h = jnp.maximum(h + b_hid_ref[i + 1], 0.0).astype(COMPUTE_DTYPE)
    # Layer 6 (no activation): route sample g's scalar to lane g of 8 lanes.
    y = jnp.dot(h, w_out_ref[...], preferred_element_type=jnp.float32)
    o_ref[...] = (y + b_out_ref[...]).astype(o_ref.dtype)        # (tile, 8)


def pack_params(params, dtype=COMPUTE_DTYPE):
    """Pad + pack parameters ONCE at init into the 4-sample block-diagonal layout."""
    (w1, b1), (w2, b2), (w3, b3), (w4, b4), (w5, b5), (w6, b6) = params

    # Layer 1: (2,25) -> (8,128): rows [2g,2g+1] feed lanes [32g, 32g+25).
    w_in = jnp.zeros((IN_LANES, LANE), jnp.float32)
    for g in range(PACK):
        w_in = w_in.at[IN_F * g:IN_F * (g + 1), HPAD * g:HPAD * g + HID].set(w1)

    # Hidden layers: (25,25) -> 128x128 block-diagonal of 4 identical blocks.
    def block_diag(w):
        wp = jnp.zeros((LANE, LANE), jnp.float32)
        for g in range(PACK):
            wp = wp.at[HPAD * g:HPAD * g + HID, HPAD * g:HPAD * g + HID].set(w)
        return wp

    w_hid = jnp.stack([block_diag(w) for w in (w2, w3, w4, w5)])      # (4,128,128)

    # Output layer: (25,1) -> (128,8): block g's 25 lanes feed output lane g.
    w_out = jnp.zeros((LANE, OUT_LANES), jnp.float32)
    for g in range(PACK):
        w_out = w_out.at[HPAD * g:HPAD * g + HID, g].set(w6[:, 0])

    # Biases of layers 1..5: pad 25->32 and tile across the 4 sample blocks.
    def tile_bias(b):
        return jnp.tile(jnp.pad(b, (0, HPAD - HID)), PACK).reshape(1, LANE)

    b_hid = jnp.stack([tile_bias(b) for b in (b1, b2, b3, b4, b5)])   # (5,1,128)
    b_out = jnp.zeros((1, OUT_LANES), jnp.float32).at[0, :PACK].set(b6[0])

    # Weights in bf16 (MXU operands); biases stay f32 (added to f32 accumulators).
    return (w_in.astype(dtype), w_hid.astype(dtype), w_out.astype(dtype),
            b_hid, b_out)


@jax.jit
def net_forward(x, w_in, w_hid, w_out, b_hid, b_out):
    """x: (B, 2) float32 -> (B, 1) float32."""
    B = x.shape[0]
    rows = -(-B // PACK)                         # packed rows (4 samples each)
    rows8 = ((rows + 7) // 8) * 8                # sublane-aligned row count
    n_steps = max(1, -(-rows8 // TILE_ROWS_MAX))
    if rows8 >= 16:
        n_steps = max(n_steps, 2)                # >=2 grid steps: both v7x TCs busy
    tile = ((-(-rows8 // n_steps) + 7) // 8) * 8
    rows_p = n_steps * tile

    total = rows_p * PACK
    if total != B:                               # pad batch rows only when needed
        x = jnp.pad(x, ((0, total - B), (0, 0)))
    xp = x.reshape(rows_p, IN_LANES)             # free row-major repack: 4 samples/row

    out = pl.pallas_call(
        mlp_kernel,
        out_shape=jax.ShapeDtypeStruct((rows_p, OUT_LANES), jnp.float32),
        grid=(n_steps,),
        in_specs=[
            # Input stream (double-buffered by Pallas).
            pl.BlockSpec((tile, IN_LANES), lambda i: (i, 0)),
            # Constant block index -> weights/biases fetched once, stay resident.
            pl.BlockSpec((IN_LANES, LANE), lambda i: (0, 0)),
            pl.BlockSpec((N_HID_LAYERS, LANE, LANE), lambda i: (0, 0, 0)),
            pl.BlockSpec((N_HID_LAYERS + 1, 1, LANE), lambda i: (0, 0, 0)),
            pl.BlockSpec((LANE, OUT_LANES), lambda i: (0, 0)),
            pl.BlockSpec((1, OUT_LANES), lambda i: (0, 0)),
        ],
        out_specs=pl.BlockSpec((tile, OUT_LANES), lambda i: (i, 0)),
        compiler_params=pltpu.CompilerParams(
            dimension_semantics=("parallel",)),
    )(xp, w_in, w_hid, b_hid, w_out, b_out)

    # Lanes 0..3 of each packed row hold that row's 4 sample outputs, in order.
    return out[:, :PACK].reshape(-1, OUT_F)[:B]


def init_params(key):
    """Deterministic init mimicking nn.Linear shapes (W stored as (in, out))."""
    sizes = [(IN_F, HID), (HID, HID), (HID, HID), (HID, HID), (HID, HID), (HID, OUT_F)]
    params = []
    for i, (fin, fout) in enumerate(sizes):
        kw, kb = jax.random.split(jax.random.fold_in(key, i))
        bound = 1.0 / jnp.sqrt(jnp.float32(fin))
        w = jax.random.uniform(kw, (fin, fout), jnp.float32, -bound, bound)
        b = jax.random.uniform(kb, (fout,), jnp.float32, -bound, bound)
        params.append((w, b))
    return params


def reference_forward(x, params, dtype=jnp.float32):
    """Pure-JAX reference. dtype=bfloat16 mirrors the kernel's mixed precision."""
    h = x.astype(dtype)
    for i, (w, b) in enumerate(params):
        h = jnp.dot(h, w.astype(dtype), preferred_element_type=jnp.float32) + b
        if i < len(params) - 1:
            h = jnp.maximum(h, 0.0).astype(dtype)
    return h


if __name__ == "__main__":
    key = jax.random.PRNGKey(0)
    params = init_params(key)
    packed = pack_params(params)     # one-time pad/pack (bf16 weights, f32 biases)

    # Small example consistent with the module: batch=8, in_features=2.
    x = jax.random.normal(jax.random.fold_in(key, 100), (8, IN_F), jnp.float32)
    y = jax.block_until_ready(net_forward(x, *packed))
    assert y.shape == (8, OUT_F), y.shape
    # Tight check vs. a reference mirroring the kernel's bf16/f32 mixed precision.
    assert jnp.allclose(y, reference_forward(x, params, jnp.bfloat16),
                        atol=1e-4, rtol=1e-4)
    # Fidelity check vs. full-f32 module semantics (tolerance = bf16 rounding).
    assert jnp.allclose(y, reference_forward(x, params, jnp.float32),
                        atol=5e-2, rtol=5e-2)

    # Exercise the multi-step grid + batch-padding path (B not a multiple of 4).
    x2 = jax.random.normal(jax.random.fold_in(key, 200), (1030, IN_F), jnp.float32)
    y2 = jax.block_until_ready(net_forward(x2, *packed))
    assert y2.shape == (1030, OUT_F), y2.shape
    assert jnp.allclose(y2, reference_forward(x2, params, jnp.bfloat16),
                        atol=1e-4, rtol=1e-4)
    assert jnp.allclose(y2, reference_forward(x2, params, jnp.float32),
                        atol=5e-2, rtol=5e-2)

    print("KERNEL_OK")
</pallas_src>

<mosaic_0001>
module attributes {stable_mosaic.version = 11 : i64} {
  func.func @mlp_kernel(%arg0: i32, %arg1: memref<8x8xf32, #tpu.memory_space<vmem>>, %arg2: memref<8x128xbf16, #tpu.memory_space<vmem>>, %arg3: memref<4x128x128xbf16, #tpu.memory_space<vmem>>, %arg4: memref<5x1x128xf32, #tpu.memory_space<vmem>>, %arg5: memref<128x8xbf16, #tpu.memory_space<vmem>>, %arg6: memref<1x8xf32, #tpu.memory_space<vmem>>, %arg7: memref<8x8xf32, #tpu.memory_space<vmem>>) attributes {dimension_semantics = [#tpu.dimension_semantics<parallel>], iteration_bounds = array<i64: 1>, scalar_prefetch = 0 : i64, scratch_operands = 0 : i64, tpu.core_type = #tpu.core_type<tc>, window_params = [{transform_indices = @transform_0, window_bounds = array<i64: 8, 8>}, {pipeline_mode = #tpu.pipeline_mode<synchronous>, transform_indices = @transform_1, window_bounds = array<i64: 8, 128>}, {pipeline_mode = #tpu.pipeline_mode<synchronous>, transform_indices = @transform_2, window_bounds = array<i64: 4, 128, 128>}, {pipeline_mode = #tpu.pipeline_mode<synchronous>, transform_indices = @transform_3, window_bounds = array<i64: 5, 1, 128>}, {pipeline_mode = #tpu.pipeline_mode<synchronous>, transform_indices = @transform_4, window_bounds = array<i64: 128, 8>}, {pipeline_mode = #tpu.pipeline_mode<synchronous>, transform_indices = @transform_5, window_bounds = array<i64: 1, 8>}, {transform_indices = @transform_6, window_bounds = array<i64: 8, 8>}]} {
    %c0 = arith.constant 0 : index
    %c0_0 = arith.constant 0 : index
    %0 = vector.load %arg1[%c0, %c0_0] : memref<8x8xf32, #tpu.memory_space<vmem>>, vector<8x8xf32>
    %1 = arith.truncf %0 : vector<8x8xf32> to vector<8x8xbf16>
    %c0_1 = arith.constant 0 : index
    %c0_2 = arith.constant 0 : index
    %2 = vector.load %arg2[%c0_1, %c0_2] : memref<8x128xbf16, #tpu.memory_space<vmem>>, vector<8x128xbf16>
    %cst = arith.constant dense<0.000000e+00> : vector<8x128xf32>
    %3 = tpu.matmul %1, %2, %cst {dimension_numbers = #tpu.dot_dimension_numbers<[1], [0], [0], [1], [0, 0, 1, 1], [], []>} : vector<8x8xbf16>, vector<8x128xbf16>, vector<8x128xf32> -> vector<8x128xf32>
    %c0_3 = arith.constant 0 : index
    %c0_4 = arith.constant 0 : index
    %c0_5 = arith.constant 0 : index
    %4 = vector.load %arg4[%c0_3, %c0_4, %c0_5] : memref<5x1x128xf32, #tpu.memory_space<vmem>>, vector<1x1x128xf32>
    %5 = vector.shape_cast %4 : vector<1x1x128xf32> to vector<1x128xf32>
    %6 = vector.broadcast %5 : vector<1x128xf32> to vector<8x128xf32>
    %7 = arith.addf %3, %6 : vector<8x128xf32>
    %cst_6 = arith.constant 0.000000e+00 : f32
    %8 = vector.broadcast %cst_6 : f32 to vector<8x128xf32>
    %9 = arith.maximumf %7, %8 : vector<8x128xf32>
    %10 = arith.truncf %9 : vector<8x128xf32> to vector<8x128xbf16>
    %c0_7 = arith.constant 0 : index
    %c0_8 = arith.constant 0 : index
    %c0_9 = arith.constant 0 : index
    %11 = vector.load %arg3[%c0_7, %c0_8, %c0_9] : memref<4x128x128xbf16, #tpu.memory_space<vmem>>, vector<1x128x128xbf16>
    %12 = vector.shape_cast %11 : vector<1x128x128xbf16> to vector<128x128xbf16>
    %cst_10 = arith.constant dense<0.000000e+00> : vector<8x128xf32>
    %13 = tpu.matmul %10, %12, %cst_10 {dimension_numbers = #tpu.dot_dimension_numbers<[1], [0], [0], [1], [0, 0, 1, 1], [], []>} : vector<8x128xbf16>, vector<128x128xbf16>, vector<8x128xf32> -> vector<8x128xf32>
    %c1 = arith.constant 1 : index
    %c0_11 = arith.constant 0 : index
    %c0_12 = arith.constant 0 : index
    %14 = vector.load %arg4[%c1, %c0_11, %c0_12] : memref<5x1x128xf32, #tpu.memory_space<vmem>>, vector<1x1x128xf32>
    %15 = vector.shape_cast %14 : vector<1x1x128xf32> to vector<1x128xf32>
    %16 = vector.broadcast %15 : vector<1x128xf32> to vector<8x128xf32>
    %17 = arith.addf %13, %16 : vector<8x128xf32>
    %cst_13 = arith.constant 0.000000e+00 : f32
    %18 = vector.broadcast %cst_13 : f32 to vector<8x128xf32>
    %19 = arith.maximumf %17, %18 : vector<8x128xf32>
    %20 = arith.truncf %19 : vector<8x128xf32> to vector<8x128xbf16>
    %c1_14 = arith.constant 1 : index
    %c0_15 = arith.constant 0 : index
    %c0_16 = arith.constant 0 : index
    %21 = vector.load %arg3[%c1_14, %c0_15, %c0_16] : memref<4x128x128xbf16, #tpu.memory_space<vmem>>, vector<1x128x128xbf16>
    %22 = vector.shape_cast %21 : vector<1x128x128xbf16> to vector<128x128xbf16>
    %cst_17 = arith.constant dense<0.000000e+00> : vector<8x128xf32>
    %23 = tpu.matmul %20, %22, %cst_17 {dimension_numbers = #tpu.dot_dimension_numbers<[1], [0], [0], [1], [0, 0, 1, 1], [], []>} : vector<8x128xbf16>, vector<128x128xbf16>, vector<8x128xf32> -> vector<8x128xf32>
    %c2 = arith.constant 2 : index
    %c0_18 = arith.constant 0 : index
    %c0_19 = arith.constant 0 : index
    %24 = vector.load %arg4[%c2, %c0_18, %c0_19] : memref<5x1x128xf32, #tpu.memory_space<vmem>>, vector<1x1x128xf32>
    %25 = vector.shape_cast %24 : vector<1x1x128xf32> to vector<1x128xf32>
    %26 = vector.broadcast %25 : vector<1x128xf32> to vector<8x128xf32>
    %27 = arith.addf %23, %26 : vector<8x128xf32>
    %cst_20 = arith.constant 0.000000e+00 : f32
    %28 = vector.broadcast %cst_20 : f32 to vector<8x128xf32>
    %29 = arith.maximumf %27, %28 : vector<8x128xf32>
    %30 = arith.truncf %29 : vector<8x128xf32> to vector<8x128xbf16>
    %c2_21 = arith.constant 2 : index
    %c0_22 = arith.constant 0 : index
    %c0_23 = arith.constant 0 : index
    %31 = vector.load %arg3[%c2_21, %c0_22, %c0_23] : memref<4x128x128xbf16, #tpu.memory_space<vmem>>, vector<1x128x128xbf16>
    %32 = vector.shape_cast %31 : vector<1x128x128xbf16> to vector<128x128xbf16>
    %cst_24 = arith.constant dense<0.000000e+00> : vector<8x128xf32>
    %33 = tpu.matmul %30, %32, %cst_24 {dimension_numbers = #tpu.dot_dimension_numbers<[1], [0], [0], [1], [0, 0, 1, 1], [], []>} : vector<8x128xbf16>, vector<128x128xbf16>, vector<8x128xf32> -> vector<8x128xf32>
    %c3 = arith.constant 3 : index
    %c0_25 = arith.constant 0 : index
    %c0_26 = arith.constant 0 : index
    %34 = vector.load %arg4[%c3, %c0_25, %c0_26] : memref<5x1x128xf32, #tpu.memory_space<vmem>>, vector<1x1x128xf32>
    %35 = vector.shape_cast %34 : vector<1x1x128xf32> to vector<1x128xf32>
    %36 = vector.broadcast %35 : vector<1x128xf32> to vector<8x128xf32>
    %37 = arith.addf %33, %36 : vector<8x128xf32>
    %cst_27 = arith.constant 0.000000e+00 : f32
    %38 = vector.broadcast %cst_27 : f32 to vector<8x128xf32>
    %39 = arith.maximumf %37, %38 : vector<8x128xf32>
    %40 = arith.truncf %39 : vector<8x128xf32> to vector<8x128xbf16>
    %c3_28 = arith.constant 3 : index
    %c0_29 = arith.constant 0 : index
    %c0_30 = arith.constant 0 : index
    %41 = vector.load %arg3[%c3_28, %c0_29, %c0_30] : memref<4x128x128xbf16, #tpu.memory_space<vmem>>, vector<1x128x128xbf16>
    %42 = vector.shape_cast %41 : vector<1x128x128xbf16> to vector<128x128xbf16>
    %cst_31 = arith.constant dense<0.000000e+00> : vector<8x128xf32>
    %43 = tpu.matmul %40, %42, %cst_31 {dimension_numbers = #tpu.dot_dimension_numbers<[1], [0], [0], [1], [0, 0, 1, 1], [], []>} : vector<8x128xbf16>, vector<128x128xbf16>, vector<8x128xf32> -> vector<8x128xf32>
    %c4 = arith.constant 4 : index
    %c0_32 = arith.constant 0 : index
    %c0_33 = arith.constant 0 : index
    %44 = vector.load %arg4[%c4, %c0_32, %c0_33] : memref<5x1x128xf32, #tpu.memory_space<vmem>>, vector<1x1x128xf32>
    %45 = vector.shape_cast %44 : vector<1x1x128xf32> to vector<1x128xf32>
    %46 = vector.broadcast %45 : vector<1x128xf32> to vector<8x128xf32>
    %47 = arith.addf %43, %46 : vector<8x128xf32>
    %cst_34 = arith.constant 0.000000e+00 : f32
    %48 = vector.broadcast %cst_34 : f32 to vector<8x128xf32>
    %49 = arith.maximumf %47, %48 : vector<8x128xf32>
    %50 = arith.truncf %49 : vector<8x128xf32> to vector<8x128xbf16>
    %c0_35 = arith.constant 0 : index
    %c0_36 = arith.constant 0 : index
    %51 = vector.load %arg5[%c0_35, %c0_36] : memref<128x8xbf16, #tpu.memory_space<vmem>>, vector<128x8xbf16>
    %cst_37 = arith.constant dense<0.000000e+00> : vector<8x8xf32>
    %52 = tpu.matmul %50, %51, %cst_37 {dimension_numbers = #tpu.dot_dimension_numbers<[1], [0], [0], [1], [0, 0, 1, 1], [], []>} : vector<8x128xbf16>, vector<128x8xbf16>, vector<8x8xf32> -> vector<8x8xf32>
    %c0_38 = arith.constant 0 : index
    %c0_39 = arith.constant 0 : index
    %53 = vector.load %arg6[%c0_38, %c0_39] : memref<1x8xf32, #tpu.memory_space<vmem>>, vector<1x8xf32>
    %54 = vector.broadcast %53 : vector<1x8xf32> to vector<8x8xf32>
    %55 = arith.addf %52, %54 : vector<8x8xf32>
    %c0_40 = arith.constant 0 : index
    %c0_41 = arith.constant 0 : index
    %56 = vector.load %arg7[%c0_40, %c0_41] : memref<8x8xf32, #tpu.memory_space<vmem>>, vector<8x8xf32>
    tpu.vector_store %arg7[%c0_40, %c0_41], %55 {strides = array<i32>} : memref<8x8xf32, #tpu.memory_space<vmem>>, vector<8x8xf32>,
    return
  }
  func.func @transform_0(%arg0: i32) -> (i32, i32) {
    %c0_i32 = arith.constant 0 : i32
    %c0_i32_0 = arith.constant 0 : i32
    return %arg0, %c0_i32 : i32, i32
  }
  func.func @transform_1(%arg0: i32) -> (i32, i32) {
    %c0_i32 = arith.constant 0 : i32
    %c0_i32_0 = arith.constant 0 : i32
    %c0_i32_1 = arith.constant 0 : i32
    return %c0_i32, %c0_i32_0 : i32, i32
  }
  func.func @transform_2(%arg0: i32) -> (i32, i32, i32) {
    %c0_i32 = arith.constant 0 : i32
    %c0_i32_0 = arith.constant 0 : i32
    %c0_i32_1 = arith.constant 0 : i32
    %c0_i32_2 = arith.constant 0 : i32
    return %c0_i32, %c0_i32_0, %c0_i32_1 : i32, i32, i32
  }
  func.func @transform_3(%arg0: i32) -> (i32, i32, i32) {
    %c0_i32 = arith.constant 0 : i32
    %c0_i32_0 = arith.constant 0 : i32
    %c0_i32_1 = arith.constant 0 : i32
    %c0_i32_2 = arith.constant 0 : i32
    return %c0_i32, %c0_i32_0, %c0_i32_1 : i32, i32, i32
  }
  func.func @transform_4(%arg0: i32) -> (i32, i32) {
    %c0_i32 = arith.constant 0 : i32
    %c0_i32_0 = arith.constant 0 : i32
    %c0_i32_1 = arith.constant 0 : i32
    return %c0_i32, %c0_i32_0 : i32, i32
  }
  func.func @transform_5(%arg0: i32) -> (i32, i32) {
    %c0_i32 = arith.constant 0 : i32
    %c0_i32_0 = arith.constant 0 : i32
    %c0_i32_1 = arith.constant 0 : i32
    return %c0_i32, %c0_i32_0 : i32, i32
  }
  func.func @transform_6(%arg0: i32) -> (i32, i32) {
    %c0_i32 = arith.constant 0 : i32
    %c0_i32_0 = arith.constant 0 : i32
    return %arg0, %c0_i32 : i32, i32
  }
}

</mosaic_0001>

<llo_original>
// kernel: net_forward.1
$region0: #{net_forward.1}
  #allocation0 [shape = 'u32[]', space=smem, size = 0x4, offset = 0x4, fixed_abs, tag = 'smem constant byte address 0x4 - core index']
  #allocation1 [shape = 'u32[144,128]{1,0:T(1,128)}', space=vmem, size = 0x12000, scoped, tag = 'internal scratch']
  %s0 = inlined_call_operand.vmem [shape: f32[8,8], index: 0, kind: input, shape index: {}]
  %s1 = inlined_call_operand.vmem [shape: bf16[8,128], index: 1, kind: input, shape index: {}]
  %s2 = inlined_call_operand.hbm [shape: bf16[4,128,128], index: 2, kind: input, shape index: {}]
  %s3 = inlined_call_operand.vmem [shape: f32[5,1,128], index: 3, kind: input, shape index: {}]
  %s4 = inlined_call_operand.vmem [shape: bf16[128,8], index: 4, kind: input, shape index: {}]
  %s5 = inlined_call_operand.vmem [shape: f32[1,8], index: 5, kind: input, shape index: {}]
  %s6 = inlined_call_operand.vmem [shape: f32[8,8], index: 6, kind: output, shape index: {}]
  %s7 = sld [smem:[#allocation0]]
  $region38: #{net_forward.1} parent=0
    _
  %s9 = ssub.s32 1, %s7
  %s10 = scalar_select 0, %s9, %s7
  $region1: #{net_forward.1} parent=0
    #allocation2 [shape = 'u8[131072]{0}', space=vmem, size = 0x20000, scoped, tag = 'input window, operand 2, single buffered']
    #allocation3 [shape = 's32[1]{0}', space=sflag, size = 0x4, scoped, tag = 'scoped memory for net_forward.1']
    %11 = vsyncpa [#allocation3], 0
    // Predicated region
    $region2: #{net_forward.1} parent=1 // pred_check
      _
    $region3: #{net_forward.1} parent=1 // pred_check_branch
      %13 = sbr.rel (0) target = $region5
    $region4: #{net_forward.1} parent=1 // pred_region
      _
    $region5: #{net_forward.1} parent=1 // pred_fallthru
      _
    // Predicated region
    $region6: #{net_forward.1} parent=1 // pred_check
      _
    $region7: #{net_forward.1} parent=1 // pred_check_branch
      %15 = sbr.rel (0) target = $region9
    $region8: #{net_forward.1} parent=1 // pred_region
      _
    $region9: #{net_forward.1} parent=1 // pred_fallthru
      _
    // Predicated region
    $region10: #{net_forward.1} parent=1 // pred_check
      _
    $region11: #{net_forward.1} parent=1 // pred_check_branch
      %17 = sbr.rel (0) target = $region13
    $region12: #{net_forward.1} parent=1 // pred_region
      %s19 = ssub.s32 4096, 4096
      %20 = vsyncadd [#allocation3], %s19
      %s21 = sshll.u32 [#allocation2], 4
      %s22 = int_to_ptr.vmem [resolvable:$true] %s21
      %27 = dma.hbm_to_vmem [thread:$0]  %s2, 4096, %s22, [#allocation3], 64, 64, 4
    $region13: #{net_forward.1} parent=1 // pred_fallthru
      _
    // Predicated region
    $region14: #{net_forward.1} parent=1 // pred_check
      _
    $region15: #{net_forward.1} parent=1 // pred_check_branch
      %29 = sbr.rel (0) target = $region17
    $region16: #{net_forward.1} parent=1 // pred_region
      _
    $region17: #{net_forward.1} parent=1 // pred_fallthru
      _
    // Predicated region
    $region18: #{net_forward.1} parent=1 // pred_check
      _
    $region19: #{net_forward.1} parent=1 // pred_check_branch
      %31 = sbr.rel (0) target = $region21
    $region20: #{net_forward.1} parent=1 // pred_region
      _
    $region21: #{net_forward.1} parent=1 // pred_fallthru
      _
    // Predicated region
    $region22: #{net_forward.1} parent=1 // pred_check
      _
    $region23: #{net_forward.1} parent=1 // pred_check_branch
      %33 = sbr.rel (0) target = $region25
    $region24: #{net_forward.1} parent=1 // pred_region
      _
    $region25: #{net_forward.1} parent=1 // pred_fallthru
      _
    // Predicated region
    $region26: #{net_forward.1} parent=1 // pred_check
      _
    $region27: #{net_forward.1} parent=1 // pred_check_branch
      %35 = sbr.rel (0) target = $region29
    $region28: #{net_forward.1} parent=1 // pred_region
      %36 = dma.done [#allocation3], 4096
    $region29: #{net_forward.1} parent=1 // pred_fallthru
      _
    %v38 = vld [vmem:[%s0] sm:$0xff]
    %v39 = vpack.c.bf16 %v38, %v38
    %v40 = vld [vmem:[%s1] sm:$0xf]
    %v41 = vld [vmem:[%s3] sm:$0x1]
    %v43 = vlaneseq
    %v44 = vshrl.u32 %v43, 7
    %v45 = vsub.s32 0, %v44
    %v46 = vrot.slane %v41, %v45
    %vm48 = vcmask 64512
    %v50 = vsel %vm48, %v39, 0
    %vm52 = vcmask 1043456
    %v54 = vsel %vm52, %v40, 0
    %56 = vmatprep.subr.bf16.mxu0 0
    %57 = vmatpush1.bf16.msra.mxu0 %v54
    %58 = vmatprep.subr.bf16.mxu0 0
    %59 = vmatpush1.bf16.msra.mxu0 0
    %60 = vmatprep.subr.bf16.mxu0 0
    %61 = vmatpush1.bf16.msra.mxu0 0
    %62 = vmatprep.subr.bf16.mxu0 0
    %63 = vmatpush1.bf16.msra.mxu0 0
    %64 = vmatprep.subr.bf16.mxu0 0
    %65 = vmatpush1.bf16.msra.mxu0 0
    %66 = vmatprep.subr.bf16.mxu0 0
    %67 = vmatpush1.bf16.msra.mxu0 0
    %68 = vmatprep.subr.bf16.mxu0 0
    %69 = vmatpush1.bf16.msra.mxu0 0
    %70 = vmatprep.subr.bf16.mxu0 0
    %71 = vmatpush1.bf16.msra.mxu0 0
    %72 = vmatprep.subr.bf16.mxu0 0
    %73 = vmatpush1.bf16.msra.mxu0 0
    %74 = vmatprep.subr.bf16.mxu0 0
    %75 = vmatpush1.bf16.msra.mxu0 0
    %76 = vmatprep.subr.bf16.mxu0 0
    %77 = vmatpush1.bf16.msra.mxu0 0
    %78 = vmatprep.subr.bf16.mxu0 0
    %79 = vmatpush1.bf16.msra.mxu0 0
    %80 = vmatprep.subr.bf16.mxu0 0
    %81 = vmatpush1.bf16.msra.mxu0 0
    %82 = vmatprep.subr.bf16.mxu0 0
    %83 = vmatpush1.bf16.msra.mxu0 0
    %84 = vmatprep.subr.bf16.mxu0 0
    %85 = vmatpush1.bf16.msra.mxu0 0
    %86 = vmatprep.subr.bf16.mxu0 0
    %87 = vmatpush1.bf16.msra.mxu0 0
    %88 = vmatprep.mubr.bf16.mxu0 0
    %89 = vmatmul.mubr.bf16.gmra.mrb[0].mxu0 %v50
    %v90 = vpop.f32.mrb[0].mxu0
    %v91 = vadd.f32 %v46, %v90
    %v92 = vpop.f32.mrb[0].mxu0
    %v93 = vpop.f32.mrb[0].mxu0
    %v94 = vpop.f32.mrb[0].mxu0
    %95 = vdwg.mxu0
    %v96 = vmax.f32 %v91, 0.0
    %v97 = vpack.c.bf16 %v96, %v96
    %v98 = vld [vmem:[#allocation2] sm:$0xf]
    %v99 = vld [vmem:[#allocation2 + $0x4] sm:$0xf]
    %v100 = vld [vmem:[#allocation2 + $0x8] sm:$0xf]
    %v101 = vld [vmem:[#allocation2 + $0xc] sm:$0xf]
    %v102 = vld [vmem:[#allocation2 + $0x10] sm:$0xf]
    %v103 = vld [vmem:[#allocation2 + $0x14] sm:$0xf]
    %v104 = vld [vmem:[#allocation2 + $0x18] sm:$0xf]
    %v105 = vld [vmem:[#allocation2 + $0x1c] sm:$0xf]
    %v106 = vld [vmem:[#allocation2 + $0x20] sm:$0xf]
    %v107 = vld [vmem:[#allocation2 + $0x24] sm:$0xf]
    %v108 = vld [vmem:[#allocation2 + $0x28] sm:$0xf]
    %v109 = vld [vmem:[#allocation2 + $0x2c] sm:$0xf]
    %v110 = vld [vmem:[#allocation2 + $0x30] sm:$0xf]
    %v111 = vld [vmem:[#allocation2 + $0x34] sm:$0xf]
    %v112 = vld [vmem:[#allocation2 + $0x38] sm:$0xf]
    %v113 = vld [vmem:[#allocation2 + $0x3c] sm:$0xf]
    %s114 = scalar_lea.vmem %s3, 1
    %v115 = vld [vmem:[%s114] sm:$0x1]
    %v117 = vlaneseq
    %v118 = vshrl.u32 %v117, 7
    %v119 = vsub.s32 0, %v118
    %v120 = vrot.slane %v115, %v119
    %v138 = vunpack.c.l.b16 %v98
    %v139 = vunpack.c.l.b16 %v99
    %v140 = vunpack.c.l.b16 %v100
    %v141 = vunpack.c.l.b16 %v101
    %v142 = vunpack.c.l.b16 %v102
    %v143 = vunpack.c.l.b16 %v103
    %v144 = vunpack.c.l.b16 %v104
    %v145 = vunpack.c.l.b16 %v105
    %v146 = vunpack.c.l.b16 %v106
    %v147 = vunpack.c.l.b16 %v107
    %v148 = vunpack.c.l.b16 %v108
    %v149 = vunpack.c.l.b16 %v109
    %v150 = vunpack.c.l.b16 %v110
    %v151 = vunpack.c.l.b16 %v111
    %v152 = vunpack.c.l.b16 %v112
    %v153 = vunpack.c.l.b16 %v113
    %v154 = vpack.c.b16 %v139, %v138
    %v155 = vpack.c.b16 %v141, %v140
    %v156 = vpack.c.b16 %v143, %v142
    %v157 = vpack.c.b16 %v145, %v144
    %v158 = vpack.c.b16 %v147, %v146
    %v159 = vpack.c.b16 %v149, %v148
    %v160 = vpack.c.b16 %v151, %v150
    %v161 = vpack.c.b16 %v153, %v152
    %170 = vmatprep.subr.bf16.mxu0 0
    %171 = vmatpush1.bf16.msra.mxu0 %v154
    %172 = vmatprep.subr.bf16.mxu0 0
    %173 = vmatpush1.bf16.msra.mxu0 %v155
    %174 = vmatprep.subr.bf16.mxu0 0
    %175 = vmatpush1.bf16.msra.mxu0 %v156
    %176 = vmatprep.subr.bf16.mxu0 0
    %177 = vmatpush1.bf16.msra.mxu0 %v157
    %178 = vmatprep.subr.bf16.mxu0 0
    %179 = vmatpush1.bf16.msra.mxu0 %v158
    %180 = vmatprep.subr.bf16.mxu0 0
    %181 = vmatpush1.bf16.msra.mxu0 %v159
    %182 = vmatprep.subr.bf16.mxu0 0
    %183 = vmatpush1.bf16.msra.mxu0 %v160
    %184 = vmatprep.subr.bf16.mxu0 0
    %185 = vmatpush1.bf16.msra.mxu0 %v161
    %186 = vmatprep.subr.bf16.mxu0 0
    %187 = vmatpush1.bf16.msra.mxu0 0
    %188 = vmatprep.subr.bf16.mxu0 0
    %189 = vmatpush1.bf16.msra.mxu0 0
    %190 = vmatprep.subr.bf16.mxu0 0
    %191 = vmatpush1.bf16.msra.mxu0 0
    %192 = vmatprep.subr.bf16.mxu0 0
    %193 = vmatpush1.bf16.msra.mxu0 0
    %194 = vmatprep.subr.bf16.mxu0 0
    %195 = vmatpush1.bf16.msra.mxu0 0
    %196 = vmatprep.subr.bf16.mxu0 0
    %197 = vmatpush1.bf16.msra.mxu0 0
    %198 = vmatprep.subr.bf16.mxu0 0
    %199 = vmatpush1.bf16.msra.mxu0 0
    %200 = vmatprep.subr.bf16.mxu0 0
    %201 = vmatpush1.bf16.msra.mxu0 0
    %202 = vmatprep.mubr.bf16.mxu0 0
    %203 = vmatmul.mubr.bf16.gmra.mrb[0].mxu0 %v97
    %v204 = vpop.f32.mrb[0].mxu0
    %v205 = vadd.f32 %v120, %v204
    %v206 = vpop.f32.mrb[0].mxu0
    %v207 = vpop.f32.mrb[0].mxu0
    %v208 = vpop.f32.mrb[0].mxu0
    %209 = vdwg.mxu0
    %v210 = vmax.f32 %v205, 0.0
    %v211 = vpack.c.bf16 %v210, %v210
    %s212 = scalar_lea.vmem [#allocation2], 64
    %v213 = vld [vmem:[%s212] sm:$0xf]
    %v214 = vld [vmem:[%s212 + $0x4] sm:$0xf]
    %v215 = vld [vmem:[%s212 + $0x8] sm:$0xf]
    %v216 = vld [vmem:[%s212 + $0xc] sm:$0xf]
    %v217 = vld [vmem:[%s212 + $0x10] sm:$0xf]
    %v218 = vld [vmem:[%s212 + $0x14] sm:$0xf]
    %v219 = vld [vmem:[%s212 + $0x18] sm:$0xf]
    %v220 = vld [vmem:[%s212 + $0x1c] sm:$0xf]
    %v221 = vld [vmem:[%s212 + $0x20] sm:$0xf]
    %v222 = vld [vmem:[%s212 + $0x24] sm:$0xf]
    %v223 = vld [vmem:[%s212 + $0x28] sm:$0xf]
    %v224 = vld [vmem:[%s212 + $0x2c] sm:$0xf]
    %v225 = vld [vmem:[%s212 + $0x30] sm:$0xf]
    %v226 = vld [vmem:[%s212 + $0x34] sm:$0xf]
    %v227 = vld [vmem:[%s212 + $0x38] sm:$0xf]
    %v228 = vld [vmem:[%s212 + $0x3c] sm:$0xf]
    %s229 = scalar_lea.vmem %s3, 2
    %v230 = vld [vmem:[%s229] sm:$0x1]
    %v232 = vlaneseq
    %v233 = vshrl.u32 %v232, 7
    %v234 = vsub.s32 0, %v233
    %v235 = vrot.slane %v230, %v234
    %v253 = vunpack.c.l.b16 %v213
    %v254 = vunpack.c.l.b16 %v214
    %v255 = vunpack.c.l.b16 %v215
    %v256 = vunpack.c.l.b16 %v216
    %v257 = vunpack.c.l.b16 %v217
    %v258 = vunpack.c.l.b16 %v218
    %v259 = vunpack.c.l.b16 %v219
    %v260 = vunpack.c.l.b16 %v220
    %v261 = vunpack.c.l.b16 %v221
    %v262 = vunpack.c.l.b16 %v222
    %v263 = vunpack.c.l.b16 %v223
    %v264 = vunpack.c.l.b16 %v224
    %v265 = vunpack.c.l.b16 %v225
    %v266 = vunpack.c.l.b16 %v226
    %v267 = vunpack.c.l.b16 %v227
    %v268 = vunpack.c.l.b16 %v228
    %v269 = vpack.c.b16 %v254, %v253
    %v270 = vpack.c.b16 %v256, %v255
    %v271 = vpack.c.b16 %v258, %v257
    %v272 = vpack.c.b16 %v260, %v259
    %v273 = vpack.c.b16 %v262, %v261
    %v274 = vpack.c.b16 %v264, %v263
    %v275 = vpack.c.b16 %v266, %v265
    %v276 = vpack.c.b16 %v268, %v267
    %285 = vmatprep.subr.bf16.mxu0 0
    %286 = vmatpush1.bf16.msra.mxu0 %v269
    %287 = vmatprep.subr.bf16.mxu0 0
    %288 = vmatpush1.bf16.msra.mxu0 %v270
    %289 = vmatprep.subr.bf16.mxu0 0
    %290 = vmatpush1.bf16.msra.mxu0 %v271
    %291 = vmatprep.subr.bf16.mxu0 0
    %292 = vmatpush1.bf16.msra.mxu0 %v272
    %293 = vmatprep.subr.bf16.mxu0 0
    %294 = vmatpush1.bf16.msra.mxu0 %v273
    %295 = vmatprep.subr.bf16.mxu0 0
    %296 = vmatpush1.bf16.msra.mxu0 %v274
    %297 = vmatprep.subr.bf16.mxu0 0
    %298 = vmatpush1.bf16.msra.mxu0 %v275
    %299 = vmatprep.subr.bf16.mxu0 0
    %300 = vmatpush1.bf16.msra.mxu0 %v276
    %301 = vmatprep.subr.bf16.mxu0 0
    %302 = vmatpush1.bf16.msra.mxu0 0
    %303 = vmatprep.subr.bf16.mxu0 0
    %304 = vmatpush1.bf16.msra.mxu0 0
    %305 = vmatprep.subr.bf16.mxu0 0
    %306 = vmatpush1.bf16.msra.mxu0 0
    %307 = vmatprep.subr.bf16.mxu0 0
    %308 = vmatpush1.bf16.msra.mxu0 0
    %309 = vmatprep.subr.bf16.mxu0 0
    %310 = vmatpush1.bf16.msra.mxu0 0
    %311 = vmatprep.subr.bf16.mxu0 0
    %312 = vmatpush1.bf16.msra.mxu0 0
    %313 = vmatprep.subr.bf16.mxu0 0
    %314 = vmatpush1.bf16.msra.mxu0 0
    %315 = vmatprep.subr.bf16.mxu0 0
    %316 = vmatpush1.bf16.msra.mxu0 0
    %317 = vmatprep.mubr.bf16.mxu0 0
    %318 = vmatmul.mubr.bf16.gmra.mrb[0].mxu0 %v211
    %v319 = vpop.f32.mrb[0].mxu0
    %v320 = vadd.f32 %v235, %v319
    %v321 = vpop.f32.mrb[0].mxu0
    %v322 = vpop.f32.mrb[0].mxu0
    %v323 = vpop.f32.mrb[0].mxu0
    %324 = vdwg.mxu0
    %v325 = vmax.f32 %v320, 0.0
    %v326 = vpack.c.bf16 %v325, %v325
    %s327 = scalar_lea.vmem [#allocation2], 128
    %v328 = vld [vmem:[%s327] sm:$0xf]
    %v329 = vld [vmem:[%s327 + $0x4] sm:$0xf]
    %v330 = vld [vmem:[%s327 + $0x8] sm:$0xf]
    %v331 = vld [vmem:[%s327 + $0xc] sm:$0xf]
    %v332 = vld [vmem:[%s327 + $0x10] sm:$0xf]
    %v333 = vld [vmem:[%s327 + $0x14] sm:$0xf]
    %v334 = vld [vmem:[%s327 + $0x18] sm:$0xf]
    %v335 = vld [vmem:[%s327 + $0x1c] sm:$0xf]
    %v336 = vld [vmem:[%s327 + $0x20] sm:$0xf]
    %v337 = vld [vmem:[%s327 + $0x24] sm:$0xf]
    %v338 = vld [vmem:[%s327 + $0x28] sm:$0xf]
    %v339 = vld [vmem:[%s327 + $0x2c] sm:$0xf]
    %v340 = vld [vmem:[%s327 + $0x30] sm:$0xf]
    %v341 = vld [vmem:[%s327 + $0x34] sm:$0xf]
    %v342 = vld [vmem:[%s327 + $0x38] sm:$0xf]
    %v343 = vld [vmem:[%s327 + $0x3c] sm:$0xf]
    %s344 = scalar_lea.vmem %s3, 3
    %v345 = vld [vmem:[%s344] sm:$0x1]
    %v347 = vlaneseq
    %v348 = vshrl.u32 %v347, 7
    %v349 = vsub.s32 0, %v348
    %v350 = vrot.slane %v345, %v349
    %v368 = vunpack.c.l.b16 %v328
    %v369 = vunpack.c.l.b16 %v329
    %v370 = vunpack.c.l.b16 %v330
    %v371 = vunpack.c.l.b16 %v331
    %v372 = vunpack.c.l.b16 %v332
    %v373 = vunpack.c.l.b16 %v333
    %v374 = vunpack.c.l.b16 %v334
    %v375 = vunpack.c.l.b16 %v335
    %v376 = vunpack.c.l.b16 %v336
    %v377 = vunpack.c.l.b16 %v337
    %v378 = vunpack.c.l.b16 %v338
    %v379 = vunpack.c.l.b16 %v339
    %v380 = vunpack.c.l.b16 %v340
    %v381 = vunpack.c.l.b16 %v341
    %v382 = vunpack.c.l.b16 %v342
    %v383 = vunpack.c.l.b16 %v343
    %v384 = vpack.c.b16 %v369, %v368
    %v385 = vpack.c.b16 %v371, %v370
    %v386 = vpack.c.b16 %v373, %v372
    %v387 = vpack.c.b16 %v375, %v374
    %v388 = vpack.c.b16 %v377, %v376
    %v389 = vpack.c.b16 %v379, %v378
    %v390 = vpack.c.b16 %v381, %v380
    %v391 = vpack.c.b16 %v383, %v382
    %400 = vmatprep.subr.bf16.mxu0 0
    %401 = vmatpush1.bf16.msra.mxu0 %v384
    %402 = vmatprep.subr.bf16.mxu0 0
    %403 = vmatpush1.bf16.msra.mxu0 %v385
    %404 = vmatprep.subr.bf16.mxu0 0
    %405 = vmatpush1.bf16.msra.mxu0 %v386
    %406 = vmatprep.subr.bf16.mxu0 0
    %407 = vmatpush1.bf16.msra.mxu0 %v387
    %408 = vmatprep.subr.bf16.mxu0 0
    %409 = vmatpush1.bf16.msra.mxu0 %v388
    %410 = vmatprep.subr.bf16.mxu0 0
    %411 = vmatpush1.bf16.msra.mxu0 %v389
    %412 = vmatprep.subr.bf16.mxu0 0
    %413 = vmatpush1.bf16.msra.mxu0 %v390
    %414 = vmatprep.subr.bf16.mxu0 0
    %415 = vmatpush1.bf16.msra.mxu0 %v391
    %416 = vmatprep.subr.bf16.mxu0 0
    %417 = vmatpush1.bf16.msra.mxu0 0
    %418 = vmatprep.subr.bf16.mxu0 0
    %419 = vmatpush1.bf16.msra.mxu0 0
    %420 = vmatprep.subr.bf16.mxu0 0
    %421 = vmatpush1.bf16.msra.mxu0 0
    %422 = vmatprep.subr.bf16.mxu0 0
    %423 = vmatpush1.bf16.msra.mxu0 0
    %424 = vmatprep.subr.bf16.mxu0 0
    %425 = vmatpush1.bf16.msra.mxu0 0
    %426 = vmatprep.subr.bf16.mxu0 0
    %427 = vmatpush1.bf16.msra.mxu0 0
    %428 = vmatprep.subr.bf16.mxu0 0
    %429 = vmatpush1.bf16.msra.mxu0 0
    %430 = vmatprep.subr.bf16.mxu0 0
    %431 = vmatpush1.bf16.msra.mxu0 0
    %432 = vmatprep.mubr.bf16.mxu0 0
    %433 = vmatmul.mubr.bf16.gmra.mrb[0].mxu0 %v326
    %v434 = vpop.f32.mrb[0].mxu0
    %v435 = vadd.f32 %v350, %v434
    %v436 = vpop.f32.mrb[0].mxu0
    %v437 = vpop.f32.mrb[0].mxu0
    %v438 = vpop.f32.mrb[0].mxu0
    %439 = vdwg.mxu0
    %v440 = vmax.f32 %v435, 0.0
    %v441 = vpack.c.bf16 %v440, %v440
    %s442 = scalar_lea.vmem [#allocation2], 192
    %v443 = vld [vmem:[%s442] sm:$0xf]
    %v444 = vld [vmem:[%s442 + $0x4] sm:$0xf]
    %v445 = vld [vmem:[%s442 + $0x8] sm:$0xf]
    %v446 = vld [vmem:[%s442 + $0xc] sm:$0xf]
    %v447 = vld [vmem:[%s442 + $0x10] sm:$0xf]
    %v448 = vld [vmem:[%s442 + $0x14] sm:$0xf]
    %v449 = vld [vmem:[%s442 + $0x18] sm:$0xf]
    %v450 = vld [vmem:[%s442 + $0x1c] sm:$0xf]
    %v451 = vld [vmem:[%s442 + $0x20] sm:$0xf]
    %v452 = vld [vmem:[%s442 + $0x24] sm:$0xf]
    %v453 = vld [vmem:[%s442 + $0x28] sm:$0xf]
    %v454 = vld [vmem:[%s442 + $0x2c] sm:$0xf]
    %v455 = vld [vmem:[%s442 + $0x30] sm:$0xf]
    %v456 = vld [vmem:[%s442 + $0x34] sm:$0xf]
    %v457 = vld [vmem:[%s442 + $0x38] sm:$0xf]
    %v458 = vld [vmem:[%s442 + $0x3c] sm:$0xf]
    %s459 = scalar_lea.vmem %s3, 4
    %v460 = vld [vmem:[%s459] sm:$0x1]
    %v462 = vlaneseq
    %v463 = vshrl.u32 %v462, 7
    %v464 = vsub.s32 0, %v463
    %v465 = vrot.slane %v460, %v464
    %v483 = vunpack.c.l.b16 %v443
    %v484 = vunpack.c.l.b16 %v444
    %v485 = vunpack.c.l.b16 %v445
    %v486 = vunpack.c.l.b16 %v446
    %v487 = vunpack.c.l.b16 %v447
    %v488 = vunpack.c.l.b16 %v448
    %v489 = vunpack.c.l.b16 %v449
    %v490 = vunpack.c.l.b16 %v450
    %v491 = vunpack.c.l.b16 %v451
    %v492 = vunpack.c.l.b16 %v452
    %v493 = vunpack.c.l.b16 %v453
    %v494 = vunpack.c.l.b16 %v454
    %v495 = vunpack.c.l.b16 %v455
    %v496 = vunpack.c.l.b16 %v456
    %v497 = vunpack.c.l.b16 %v457
    %v498 = vunpack.c.l.b16 %v458
    %v499 = vpack.c.b16 %v484, %v483
    %v500 = vpack.c.b16 %v486, %v485
    %v501 = vpack.c.b16 %v488, %v487
    %v502 = vpack.c.b16 %v490, %v489
    %v503 = vpack.c.b16 %v492, %v491
    %v504 = vpack.c.b16 %v494, %v493
    %v505 = vpack.c.b16 %v496, %v495
    %v506 = vpack.c.b16 %v498, %v497
    %515 = vmatprep.subr.bf16.mxu0 0
    %516 = vmatpush1.bf16.msra.mxu0 %v499
    %517 = vmatprep.subr.bf16.mxu0 0
    %518 = vmatpush1.bf16.msra.mxu0 %v500
    %519 = vmatprep.subr.bf16.mxu0 0
    %520 = vmatpush1.bf16.msra.mxu0 %v501
    %521 = vmatprep.subr.bf16.mxu0 0
    %522 = vmatpush1.bf16.msra.mxu0 %v502
    %523 = vmatprep.subr.bf16.mxu0 0
    %524 = vmatpush1.bf16.msra.mxu0 %v503
    %525 = vmatprep.subr.bf16.mxu0 0
    %526 = vmatpush1.bf16.msra.mxu0 %v504
    %527 = vmatprep.subr.bf16.mxu0 0
    %528 = vmatpush1.bf16.msra.mxu0 %v505
    %529 = vmatprep.subr.bf16.mxu0 0
    %530 = vmatpush1.bf16.msra.mxu0 %v506
    %531 = vmatprep.subr.bf16.mxu0 0
    %532 = vmatpush1.bf16.msra.mxu0 0
    %533 = vmatprep.subr.bf16.mxu0 0
    %534 = vmatpush1.bf16.msra.mxu0 0
    %535 = vmatprep.subr.bf16.mxu0 0
    %536 = vmatpush1.bf16.msra.mxu0 0
    %537 = vmatprep.subr.bf16.mxu0 0
    %538 = vmatpush1.bf16.msra.mxu0 0
    %539 = vmatprep.subr.bf16.mxu0 0
    %540 = vmatpush1.bf16.msra.mxu0 0
    %541 = vmatprep.subr.bf16.mxu0 0
    %542 = vmatpush1.bf16.msra.mxu0 0
    %543 = vmatprep.subr.bf16.mxu0 0
    %544 = vmatpush1.bf16.msra.mxu0 0
    %545 = vmatprep.subr.bf16.mxu0 0
    %546 = vmatpush1.bf16.msra.mxu0 0
    %547 = vmatprep.mubr.bf16.mxu0 0
    %548 = vmatmul.mubr.bf16.gmra.mrb[0].mxu0 %v441
    %v549 = vpop.f32.mrb[0].mxu0
    %v550 = vadd.f32 %v465, %v549
    %v551 = vpop.f32.mrb[0].mxu0
    %v552 = vpop.f32.mrb[0].mxu0
    %v553 = vpop.f32.mrb[0].mxu0
    %554 = vdwg.mxu0
    %v555 = vmax.f32 %v550, 0.0
    %v556 = vpack.c.bf16 %v555, %v555
    %v557 = vld [vmem:[%s4] sm:$0xf]
    %v558 = vld [vmem:[%s4 + $0x4] sm:$0xf]
    %v559 = vld [vmem:[%s4 + $0x8] sm:$0xf]
    %v560 = vld [vmem:[%s4 + $0xc] sm:$0xf]
    %v561 = vld [vmem:[%s4 + $0x10] sm:$0xf]
    %v562 = vld [vmem:[%s4 + $0x14] sm:$0xf]
    %v563 = vld [vmem:[%s4 + $0x18] sm:$0xf]
    %v564 = vld [vmem:[%s4 + $0x1c] sm:$0xf]
    %v565 = vld [vmem:[%s4 + $0x20] sm:$0xf]
    %v566 = vld [vmem:[%s4 + $0x24] sm:$0xf]
    %v567 = vld [vmem:[%s4 + $0x28] sm:$0xf]
    %v568 = vld [vmem:[%s4 + $0x2c] sm:$0xf]
    %v569 = vld [vmem:[%s4 + $0x30] sm:$0xf]
    %v570 = vld [vmem:[%s4 + $0x34] sm:$0xf]
    %v571 = vld [vmem:[%s4 + $0x38] sm:$0xf]
    %v572 = vld [vmem:[%s4 + $0x3c] sm:$0xf]
    %v573 = vld [vmem:[%s5] sm:$0x1]
    %v575 = vlaneseq
    %v576 = vshrl.u32 %v575, 7
    %v577 = vsub.s32 0, %v576
    %v578 = vrot.slane %v573, %v577
    %v596 = vunpack.c.l.b16 %v557
    %v597 = vunpack.c.l.b16 %v558
    %v598 = vunpack.c.l.b16 %v559
    %v599 = vunpack.c.l.b16 %v560
    %v600 = vunpack.c.l.b16 %v561
    %v601 = vunpack.c.l.b16 %v562
    %v602 = vunpack.c.l.b16 %v563
    %v603 = vunpack.c.l.b16 %v564
    %v604 = vunpack.c.l.b16 %v565
    %v605 = vunpack.c.l.b16 %v566
    %v606 = vunpack.c.l.b16 %v567
    %v607 = vunpack.c.l.b16 %v568
    %v608 = vunpack.c.l.b16 %v569
    %v609 = vunpack.c.l.b16 %v570
    %v610 = vunpack.c.l.b16 %v571
    %v611 = vunpack.c.l.b16 %v572
    %v612 = vpack.c.b16 %v597, %v596
    %v613 = vpack.c.b16 %v599, %v598
    %v614 = vpack.c.b16 %v601, %v600
    %v615 = vpack.c.b16 %v603, %v602
    %v616 = vpack.c.b16 %v605, %v604
    %v617 = vpack.c.b16 %v607, %v606
    %v618 = vpack.c.b16 %v609, %v608
    %v619 = vpack.c.b16 %v611, %v610
    %628 = vmatprep.subr.bf16.mxu0 0
    %629 = vmatpush1.bf16.msra.mxu0 %v612
    %630 = vmatprep.subr.bf16.mxu0 0
    %631 = vmatpush1.bf16.msra.mxu0 %v613
    %632 = vmatprep.subr.bf16.mxu0 0
    %633 = vmatpush1.bf16.msra.mxu0 %v614
    %634 = vmatprep.subr.bf16.mxu0 0
    %635 = vmatpush1.bf16.msra.mxu0 %v615
    %636 = vmatprep.subr.bf16.mxu0 0
    %637 = vmatpush1.bf16.msra.mxu0 %v616
    %638 = vmatprep.subr.bf16.mxu0 0
    %639 = vmatpush1.bf16.msra.mxu0 %v617
    %640 = vmatprep.subr.bf16.mxu0 0
    %641 = vmatpush1.bf16.msra.mxu0 %v618
    %642 = vmatprep.subr.bf16.mxu0 0
    %643 = vmatpush1.bf16.msra.mxu0 %v619
    %644 = vmatprep.subr.bf16.mxu0 0
    %645 = vmatpush1.bf16.msra.mxu0 0
    %646 = vmatprep.subr.bf16.mxu0 0
    %647 = vmatpush1.bf16.msra.mxu0 0
    %648 = vmatprep.subr.bf16.mxu0 0
    %649 = vmatpush1.bf16.msra.mxu0 0
    %650 = vmatprep.subr.bf16.mxu0 0
    %651 = vmatpush1.bf16.msra.mxu0 0
    %652 = vmatprep.subr.bf16.mxu0 0
    %653 = vmatpush1.bf16.msra.mxu0 0
    %654 = vmatprep.subr.bf16.mxu0 0
    %655 = vmatpush1.bf16.msra.mxu0 0
    %656 = vmatprep.subr.bf16.mxu0 0
    %657 = vmatpush1.bf16.msra.mxu0 0
    %658 = vmatprep.subr.bf16.mxu0 0
    %659 = vmatpush1.bf16.msra.mxu0 0
    %660 = vmatprep.mubr.bf16.mxu0 0
    %661 = vmatmul.mubr.bf16.gmra.mrb[0].mxu0 %v556
    %v662 = vpop.f32.mrb[0].mxu0
    %v663 = vadd.f32 %v578, %v662
    %v664 = vpop.f32.mrb[0].mxu0
    %v665 = vpop.f32.mrb[0].mxu0
    %v666 = vpop.f32.mrb[0].mxu0
    %667 = vdwg.mxu0
    %668 = vst.msk [vmem:[%s6] sm:$0xff] %vm48, %v663
    // Predicated region
    $region30: #{net_forward.1} parent=1 // pred_check
      _
    $region31: #{net_forward.1} parent=1 // pred_check_branch
      %670 = sbr.rel (0) target = $region33
    $region32: #{net_forward.1} parent=1 // pred_region
      _
    $region33: #{net_forward.1} parent=1 // pred_fallthru
      _
    // Predicated region
    $region34: #{net_forward.1} parent=1 // pred_check
      _
    $region35: #{net_forward.1} parent=1 // pred_check_branch
      %672 = sbr.rel (0) target = $region37
    $region36: #{net_forward.1} parent=1 // pred_region
      _
    $region37: #{net_forward.1} parent=1 // pred_fallthru
      _
    %673 = vsyncpa [#allocation3], 1

</llo_original>
